<compile_context>
chip_gen: v5e
topology: v5e:2x2
jax: 0.10.0
libtpu: 0.0.40
codegen_flags: <defaults>
</compile_context>

<pallas_src>
import functools

import jax
import jax.numpy as jnp
from jax.experimental import pallas as pl
from jax.experimental.pallas import tpu as pltpu


def _attention_block_kernel(x_ref, w_ref, b_ref, out_ref, att_ref):
    # x_ref:   (TB, C, TS) VMEM  -- TB batch rows, all C channels, TS pixels on lanes
    # w_ref:   (C,)        SMEM  -- 1x1-conv weights (out_channels = 1), f32
    # b_ref:   (1,)        SMEM  -- conv bias, f32
    # out_ref: (TB, C, TS) VMEM  -- gated output (x * attention)
    # att_ref: (TB, 1, TS) VMEM  -- attention map (lane-dense)
    x = x_ref[...]                                    # native dtype (bf16/f32)
    tb, c, ts = x.shape

    # 1x1 conv over channels: unrolled per-channel scalar accumulate in f32.
    # (No (C, TS) f32 temporary, no cross-sublane XLU reduce; C is static.)
    acc = jnp.zeros((tb, 1, ts), jnp.float32) + b_ref[0].astype(jnp.float32)
    for ch in range(c):
        acc = acc + x[:, ch:ch + 1, :].astype(jnp.float32) * w_ref[ch].astype(jnp.float32)

    att = jax.nn.sigmoid(acc)                         # f32 on the EUP, lane-dense

    # Gate in the input dtype; one lane-dense store per output tensor.
    out_ref[...] = x * att.astype(x.dtype)            # broadcast over C sublanes
    att_ref[...] = att.astype(att_ref.dtype)


def _vmem_capacity_bytes():
    """Physical VMEM per TensorCore (generation-aware), with a safe fallback."""
    try:
        info = pltpu.get_tpu_info()
        cap = getattr(info, "vmem_capacity_bytes", None)
        if cap:
            return int(cap)
    except Exception:
        pass
    return 64 * 1024 * 1024  # conservative: v7x per-TC size


def _largest_divisor_leq(n, k):
    k = int(max(1, min(n, k)))
    while n % k:
        k -= 1
    return k


def _choose_tiles(B, C, S, itemsize, tile_s=None, tile_b=None):
    """Padding-aware, generation-aware tile selection.

    Returns (tile_s, tile_b, x_buffer_count, vmem_limit_bytes).
    """
    # Sublane packing multiple: 8 for f32, 16 for bf16, 32 for int8.
    sub = max(8, 32 // itemsize)
    c_pad = ((C + sub - 1) // sub) * sub              # x/out blocks pad C on sublanes
    s_pad = ((S + 127) // 128) * 128

    vmem_phys = _vmem_capacity_bytes()
    budget = vmem_phys // 2                           # leave headroom for compiler scratch

    # Bytes per grid step, per batch row, per lane column (double-buffered):
    #   x in (c_pad) + gated out (c_pad) + att out (1 sublane padded to `sub`).
    per_row_per_lane = 2 * (2 * c_pad + sub) * itemsize

    # Largest spatial tile (multiple of 128) whose pipelined blocks fit the budget.
    if tile_s is None:
        tile_s = min(s_pad, max(128, (budget // per_row_per_lane) // 128 * 128))
    tile_s = int(min(tile_s, s_pad))

    # HBM-bound kernel: aim for >= ~1 MiB of x per grid step; if the spatial tile
    # already covers all of S and is still small, pack several batch rows per block.
    target = 1 << 20
    if tile_b is None:
        tile_b = 1
        x_row_bytes = c_pad * tile_s * itemsize
        if tile_s >= s_pad and x_row_bytes < target:
            want = -(-target // x_row_bytes)                       # ceil
            cap = max(1, budget // (per_row_per_lane * tile_s))    # budget cap on rows
            tile_b = _largest_divisor_leq(B, min(want, cap))
    tile_b = int(max(1, min(tile_b, B)))

    # v7x megacore: guarantee >= 2 grid steps whenever splittable so both TCs work.
    steps_b = -(-B // tile_b)
    steps_s = -(-s_pad // tile_s)
    if steps_b * steps_s < 2:
        if B >= 2:
            tile_b = _largest_divisor_leq(B, max(1, B // 2))
        elif s_pad >= 256:
            tile_s = ((s_pad // 2 + 127) // 128) * 128

    # Deeper input buffering only when blocks are small and the spatial grid is long
    # (hides DMA issue latency when VMEM pressure forces tiles below the 1 MiB target).
    steps_s = -(-s_pad // tile_s)
    x_block_bytes = tile_b * c_pad * tile_s * itemsize
    buf_x = 3 if (x_block_bytes < (512 << 10) and steps_s >= 4) else 2

    # Size the scoped VMEM limit to the real padded need + headroom.
    step_bytes = tile_b * (buf_x * c_pad + 2 * c_pad + 2 * sub) * tile_s * itemsize
    vmem_limit = int(min(int(vmem_phys * 0.9), max(16 << 20, step_bytes + (8 << 20))))
    return int(tile_s), int(tile_b), int(buf_x), int(vmem_limit)


@functools.partial(jax.jit, static_argnames=("tile_s", "tile_b"))
def attention_block(x_nchw, weight, bias, tile_s=None, tile_b=None):
    """Pallas implementation of AttentionBlock.forward.

    Args:
      x_nchw: (B, C, H, W) input (PyTorch NCHW convention).
      weight: (1, C, 1, 1) conv weight (out_channels=1, kernel 1x1).
      bias:   (1,) conv bias.
    Returns:
      (gated, attention) with shapes (B, C, H, W) and (B, 1, H, W),
      matching the PyTorch module exactly.
    """
    B, C, H, W = x_nchw.shape
    S = H * W
    itemsize = x_nchw.dtype.itemsize

    x_bcs = x_nchw.reshape(B, C, S)                    # free reshape, no transpose
    w_c = weight.reshape(C).astype(jnp.float32)        # SMEM scalars (32-bit)
    b_1 = bias.reshape(1).astype(jnp.float32)

    ts, tb, buf_x, vmem_limit = _choose_tiles(B, C, S, itemsize, tile_s, tile_b)
    grid = (pl.cdiv(B, tb), pl.cdiv(S, ts))            # ragged tails handled by Pallas

    x_spec_kwargs = {}
    if buf_x > 2:
        x_spec_kwargs["pipeline_mode"] = pl.Buffered(buf_x)
    x_spec = pl.BlockSpec((tb, C, ts), lambda bi, si: (bi, 0, si), **x_spec_kwargs)

    cost = pl.CostEstimate(
        flops=3 * B * C * S,                           # conv MAC + gate multiply
        transcendentals=B * S,                         # sigmoid
        bytes_accessed=(2 * C + 1) * B * S * itemsize + (C + 1) * 4,
    )

    out_bcs, att_b1s = pl.pallas_call(
        _attention_block_kernel,
        out_shape=(
            jax.ShapeDtypeStruct((B, C, S), x_nchw.dtype),
            jax.ShapeDtypeStruct((B, 1, S), x_nchw.dtype),
        ),
        grid=grid,
        in_specs=[
            x_spec,
            pl.BlockSpec(memory_space=pltpu.MemorySpace.SMEM),
            pl.BlockSpec(memory_space=pltpu.MemorySpace.SMEM),
        ],
        out_specs=(
            pl.BlockSpec((tb, C, ts), lambda bi, si: (bi, 0, si)),
            pl.BlockSpec((tb, 1, ts), lambda bi, si: (bi, 0, si)),
        ),
        compiler_params=pltpu.CompilerParams(
            dimension_semantics=("parallel", "parallel"),
            vmem_limit_bytes=vmem_limit,
        ),
        cost_estimate=cost,
    )(x_bcs, w_c, b_1)

    gated = out_bcs.reshape(B, C, H, W)
    attention = att_b1s.reshape(B, 1, H, W)
    return gated, attention


def _reference(x_nchw, weight, bias):
    # Pure-JAX reference of the PyTorch forward (for correctness check).
    logits = jnp.einsum("bchw,oc->bohw", x_nchw, weight.reshape(1, -1)) + bias.reshape(
        1, 1, 1, 1
    )
    att = jax.nn.sigmoid(logits)
    return x_nchw * att, att


def _check(x, weight, bias, tile_s=None, tile_b=None):
    gated, attention = attention_block(x, weight, bias, tile_s=tile_s, tile_b=tile_b)
    jax.block_until_ready((gated, attention))
    ref_gated, ref_att = _reference(x, weight, bias)
    assert gated.shape == x.shape
    assert attention.shape == (x.shape[0], 1, x.shape[2], x.shape[3])
    assert jnp.allclose(gated, ref_gated, atol=1e-5, rtol=1e-5)
    assert jnp.allclose(attention, ref_att, atol=1e-5, rtol=1e-5)


if __name__ == "__main__":
    key = jax.random.PRNGKey(0)
    kx, kw, kb, kx2, kx3 = jax.random.split(key, 5)

    # Main check: shapes matching the module spec (batch=2, channels=4, 16x16).
    B, C, H, W = 2, 4, 16, 16
    x = jax.random.normal(kx, (B, C, H, W), dtype=jnp.float32)
    weight = jax.random.normal(kw, (1, C, 1, 1), dtype=jnp.float32) * 0.1
    bias = jax.random.normal(kb, (1,), dtype=jnp.float32) * 0.1
    _check(x, weight, bias)

    # Ragged-tail check (S = 400, forced 128-lane tile) — also exercises the
    # deeper (3-buffer) input pipeline path used for small blocks / long grids.
    x2 = jax.random.normal(kx2, (1, C, 20, 20), dtype=jnp.float32)
    _check(x2, weight, bias, tile_s=128)

    # Batched-block check: multiple batch rows packed into one block (TB > 1).
    x3 = jax.random.normal(kx3, (4, C, 16, 16), dtype=jnp.float32)
    _check(x3, weight, bias)

    print("KERNEL_OK")
</pallas_src>

<mosaic_0001>
module attributes {stable_mosaic.version = 11 : i64} {
  func.func @_attention_block_kernel(%arg0: i32, %arg1: i32, %arg2: memref<1x4x256xf32, #tpu.memory_space<vmem>>, %arg3: memref<4xf32, #tpu.memory_space<smem>>, %arg4: memref<1xf32, #tpu.memory_space<smem>>, %arg5: memref<1x4x256xf32, #tpu.memory_space<vmem>>, %arg6: memref<1x1x256xf32, #tpu.memory_space<vmem>>) attributes {dimension_semantics = [#tpu.dimension_semantics<parallel>, #tpu.dimension_semantics<parallel>], iteration_bounds = array<i64: 2, 1>, scalar_prefetch = 0 : i64, scratch_operands = 0 : i64, tpu.core_type = #tpu.core_type<tc>, window_params = [{transform_indices = @transform_0, window_bounds = array<i64: 1, 4, 256>}, {transform_indices = @transform_1, window_bounds = array<i64: 4>}, {transform_indices = @transform_2, window_bounds = array<i64: 1>}, {transform_indices = @transform_3, window_bounds = array<i64: 1, 4, 256>}, {transform_indices = @transform_4, window_bounds = array<i64: 1, 1, 256>}]} {
    %c0 = arith.constant 0 : index
    %c0_0 = arith.constant 0 : index
    %c0_1 = arith.constant 0 : index
    %0 = vector.load %arg2[%c0, %c0_0, %c0_1] : memref<1x4x256xf32, #tpu.memory_space<vmem>>, vector<1x4x256xf32>
    %cst = arith.constant 0.000000e+00 : f32
    %1 = vector.broadcast %cst : f32 to vector<1x1x256xf32>
    %c0_2 = arith.constant 0 : index
    %2 = memref.load %arg4[%c0_2] : memref<1xf32, #tpu.memory_space<smem>>
    %3 = vector.broadcast %2 : f32 to vector<1x1x256xf32>
    %4 = arith.addf %1, %3 : vector<1x1x256xf32>
    %5 = vector.extract_strided_slice %0 {offsets = [0, 0, 0], sizes = [1, 1, 256], strides = [1, 1, 1]} : vector<1x4x256xf32> to vector<1x1x256xf32>
    %c0_3 = arith.constant 0 : index
    %6 = memref.load %arg3[%c0_3] : memref<4xf32, #tpu.memory_space<smem>>
    %7 = vector.broadcast %6 : f32 to vector<1x1x256xf32>
    %8 = arith.mulf %5, %7 : vector<1x1x256xf32>
    %9 = arith.addf %4, %8 : vector<1x1x256xf32>
    %10 = vector.extract_strided_slice %0 {offsets = [0, 1, 0], sizes = [1, 1, 256], strides = [1, 1, 1]} : vector<1x4x256xf32> to vector<1x1x256xf32>
    %c1 = arith.constant 1 : index
    %11 = memref.load %arg3[%c1] : memref<4xf32, #tpu.memory_space<smem>>
    %12 = vector.broadcast %11 : f32 to vector<1x1x256xf32>
    %13 = arith.mulf %10, %12 : vector<1x1x256xf32>
    %14 = arith.addf %9, %13 : vector<1x1x256xf32>
    %15 = vector.extract_strided_slice %0 {offsets = [0, 2, 0], sizes = [1, 1, 256], strides = [1, 1, 1]} : vector<1x4x256xf32> to vector<1x1x256xf32>
    %c2 = arith.constant 2 : index
    %16 = memref.load %arg3[%c2] : memref<4xf32, #tpu.memory_space<smem>>
    %17 = vector.broadcast %16 : f32 to vector<1x1x256xf32>
    %18 = arith.mulf %15, %17 : vector<1x1x256xf32>
    %19 = arith.addf %14, %18 : vector<1x1x256xf32>
    %20 = vector.extract_strided_slice %0 {offsets = [0, 3, 0], sizes = [1, 1, 256], strides = [1, 1, 1]} : vector<1x4x256xf32> to vector<1x1x256xf32>
    %c3 = arith.constant 3 : index
    %21 = memref.load %arg3[%c3] : memref<4xf32, #tpu.memory_space<smem>>
    %22 = vector.broadcast %21 : f32 to vector<1x1x256xf32>
    %23 = arith.mulf %20, %22 : vector<1x1x256xf32>
    %24 = arith.addf %19, %23 : vector<1x1x256xf32>
    %25 = arith.negf %24 : vector<1x1x256xf32>
    %26 = math.exp %25 : vector<1x1x256xf32>
    %cst_4 = arith.constant 1.000000e+00 : f32
    %27 = vector.broadcast %cst_4 : f32 to vector<1x1x256xf32>
    %28 = arith.addf %27, %26 : vector<1x1x256xf32>
    %29 = arith.divf %27, %28 : vector<1x1x256xf32>
    %30 = vector.broadcast %29 : vector<1x1x256xf32> to vector<1x4x256xf32>
    %31 = arith.mulf %0, %30 : vector<1x4x256xf32>
    %c0_5 = arith.constant 0 : index
    %c0_6 = arith.constant 0 : index
    %c0_7 = arith.constant 0 : index
    %32 = vector.load %arg5[%c0_5, %c0_6, %c0_7] : memref<1x4x256xf32, #tpu.memory_space<vmem>>, vector<1x4x256xf32>
    tpu.vector_store %arg5[%c0_5, %c0_6, %c0_7], %31 {strides = array<i32>} : memref<1x4x256xf32, #tpu.memory_space<vmem>>, vector<1x4x256xf32>,
    %c0_8 = arith.constant 0 : index
    %c0_9 = arith.constant 0 : index
    %c0_10 = arith.constant 0 : index
    %33 = vector.load %arg6[%c0_8, %c0_9, %c0_10] : memref<1x1x256xf32, #tpu.memory_space<vmem>>, vector<1x1x256xf32>
    tpu.vector_store %arg6[%c0_8, %c0_9, %c0_10], %29 {strides = array<i32>} : memref<1x1x256xf32, #tpu.memory_space<vmem>>, vector<1x1x256xf32>,
    return
  }
  func.func @transform_0(%arg0: i32, %arg1: i32) -> (i32, i32, i32) {
    %c0_i32 = arith.constant 0 : i32
    %c0_i32_0 = arith.constant 0 : i32
    return %arg0, %c0_i32, %arg1 : i32, i32, i32
  }
  func.func @transform_1(%arg0: i32, %arg1: i32) -> i32 {
    %c0_i32 = arith.constant 0 : i32
    %c0_i32_0 = arith.constant 0 : i32
    return %c0_i32 : i32
  }
  func.func @transform_2(%arg0: i32, %arg1: i32) -> i32 {
    %c0_i32 = arith.constant 0 : i32
    %c0_i32_0 = arith.constant 0 : i32
    return %c0_i32 : i32
  }
  func.func @transform_3(%arg0: i32, %arg1: i32) -> (i32, i32, i32) {
    %c0_i32 = arith.constant 0 : i32
    %c0_i32_0 = arith.constant 0 : i32
    return %arg0, %c0_i32, %arg1 : i32, i32, i32
  }
  func.func @transform_4(%arg0: i32, %arg1: i32) -> (i32, i32, i32) {
    %c0_i32 = arith.constant 0 : i32
    %c0_i32_0 = arith.constant 0 : i32
    return %arg0, %c0_i32, %arg1 : i32, i32, i32
  }
}

</mosaic_0001>

<llo_original>
// kernel: attention_block.1
$region0: #{attention_block.1}
  #allocation0 [shape = 'u32[]', space=smem, size = 0x4, offset = 0x4, fixed_abs, tag = 'smem constant byte address 0x4 - core index']
  #allocation1 [shape = 'u32[72,128]{1,0:T(1,128)}', space=vmem, size = 0x9000, scoped, tag = 'internal scratch']
  #allocation2 [shape = 'f32[1]{0:T(128)S(6)}', space=smem, size = 0x200, scoped, tag = 'scoped memory for attention_block.1']
  %s0 = inlined_call_operand.vmem [shape: f32[2,4,256], index: 0, kind: input, shape index: {}]
  %s1 = inlined_call_operand.vmem [shape: f32[4], index: 1, kind: input, shape index: {}]
  %s2 = inlined_call_operand.<no memory space> [shape: f32[1], index: 2, kind: input, shape index: {}]
  %s3 = inlined_call_operand.vmem [shape: f32[2,4,256], index: 3, kind: output, shape index: {0}]
  %s4 = inlined_call_operand.vmem [shape: f32[2,1,256], index: 4, kind: output, shape index: {1}]
  %5 = xla_tuple %s3, %s4
  %s6 = sld [smem:[#allocation0]]
  $region57: #{attention_block.1} parent=0
    _
  %s8 = ssub.s32 1, %s6
  %s9 = scalar_select 0, %s8, %s6
  %10 = sst [smem:[#allocation2]] %s2
  $region1: #{attention_block.1} parent=0
    #allocation3 [shape = 'u8[512]{0}', space=smem, size = 0x200, scoped, tag = 'input window, operand 1, single buffered']
    #allocation4 [shape = 's32[2]{0}', space=sflag, size = 0x8, scoped, tag = 'scoped memory for attention_block.1']
    %11 = vsyncpa [#allocation4], 0
    loop: start=0, step=1, limit=4
    $region2: #{attention_block.1} parent=1 // loop_pre_header
      _
    $region3: #{attention_block.1} parent=1 // loop_header
      %s13 = sphi 0, %s17
      %p14 = scmp.ge.s32.totalorder %s13, 4
      %s20 = sphi 0, %s32
      %s21 = sphi 0, %s28
      %s22 = sphi 0, %s20
      %s23 = sphi 0, %s21
      %s24 = sphi 0, %s22
      %s25 = sphi 0, %s23
      %s37 = sphi 0, %s39
      %s40 = sphi 0, %s37
      %s41 = sphi 0, %s40
      %s57 = sphi 0, %s41
      %s61 = sphi 0, %s61
      %s63 = sphi 0, %s61
      %s64 = sphi 0, %s63
      %s78 = sphi 0, %s64
      %s82 = sphi 0, %s82
      %s84 = sphi 0, %s82
      %s85 = sphi 0, %s84
      %s99 = sphi 0, %s85
      %s107 = sphi 0, %s109
      %s110 = sphi 0, %s107
      %s111 = sphi 0, %s110
      %s127 = sphi 0, %s111
      %s135 = sphi 0, %s137
      %s138 = sphi 0, %s135
      %s139 = sphi 0, %s138
      %s155 = sphi 0, %s139
    $region4: #{attention_block.1} parent=1 // loop_header_branch
      %16 = sbr.rel (%p14) target = $region8
    $region5: #{attention_block.1} parent=1 // loop_body
      %s18 = ssub.s32 %s13, 1
      %s19 = ssub.s32 %s13, 2
      %s26 = sadd.s32 1, %s21
      %p27 = scmp.ge.s32.totalorder %s26, 1
      %s28 = scalar_select %p27, 0, %s26
      %s29 = sadd.s32 1, %s20
      %s30 = scalar_select %p27, %s29, %s20
      %p31 = scmp.ge.s32.totalorder %s30, 2
      %s32 = scalar_select %p31, 0, %s30
      %s33 = ssub.s32 %s20, %s32
      %s34 = ssub.s32 %s21, %s28
      %s35 = sor.u32 %s33, %s34
      %p36 = scmp.eq.s32.totalorder %s35, 0
      %s38 = sadd.s32 %s37, 1
      %s39 = scalar_select %p36, %s37, %s38
      %p42 = pneg %p36
      %p43 = scmp.eq.s32.totalorder %s13, 1
      %p44 = por %p42, %p43
      %p45 = scmp.ne.s32.totalorder %s37, %s40
      %p46 = scmp.eq.s32.totalorder %s13, 0
      %p47 = por %p45, %p46
      %p48 = scmp.ne.s32.totalorder %s37, %s40
      %p49 = scmp.eq.s32.totalorder %s18, 1
      %p50 = por %p48, %p49
      %p51 = scmp.ne.s32.totalorder %s40, %s41
      %p52 = scmp.eq.s32.totalorder %s18, 0
      %p53 = por %p51, %p52
      %p54 = scmp.ne.s32.totalorder %s40, %s41
      %p55 = scmp.eq.s32.totalorder %s19, 1
      %p56 = por %p54, %p55
      %p58 = scmp.ne.s32.totalorder %s41, %s57
      %p59 = scmp.eq.s32.totalorder %s19, 0
      %p60 = por %p58, %p59
      %s62 = sadd.s32 %s61, 1
      %p65 = scmp.eq.s32.totalorder %s13, 1
      %p66 = scmp.ne.s32.totalorder %s61, %s63
      %p67 = scmp.eq.s32.totalorder %s13, 0
      %p68 = por %p66, %p67
      %p69 = scmp.ne.s32.totalorder %s61, %s63
      %p70 = scmp.eq.s32.totalorder %s18, 1
      %p71 = por %p69, %p70
      %p72 = scmp.ne.s32.totalorder %s63, %s64
      %p73 = scmp.eq.s32.totalorder %s18, 0
      %p74 = por %p72, %p73
      %p75 = scmp.ne.s32.totalorder %s63, %s64
      %p76 = scmp.eq.s32.totalorder %s19, 1
      %p77 = por %p75, %p76
      %p79 = scmp.ne.s32.totalorder %s64, %s78
      %p80 = scmp.eq.s32.totalorder %s19, 0
      %p81 = por %p79, %p80
      %s83 = sadd.s32 %s82, 1
      %p86 = scmp.eq.s32.totalorder %s13, 1
      %p87 = scmp.ne.s32.totalorder %s82, %s84
      %p88 = scmp.eq.s32.totalorder %s13, 0
      %p89 = por %p87, %p88
      %p90 = scmp.ne.s32.totalorder %s82, %s84
      %p91 = scmp.eq.s32.totalorder %s18, 1
      %p92 = por %p90, %p91
      %p93 = scmp.ne.s32.totalorder %s84, %s85
      %p94 = scmp.eq.s32.totalorder %s18, 0
      %p95 = por %p93, %p94
      %p96 = scmp.ne.s32.totalorder %s84, %s85
      %p97 = scmp.eq.s32.totalorder %s19, 1
      %p98 = por %p96, %p97
      %p100 = scmp.ne.s32.totalorder %s85, %s99
      %p101 = scmp.eq.s32.totalorder %s19, 0
      %p102 = por %p100, %p101
      %s103 = ssub.s32 %s20, %s32
      %s104 = ssub.s32 %s21, %s28
      %s105 = sor.u32 %s103, %s104
      %p106 = scmp.eq.s32.totalorder %s105, 0
      %s108 = sadd.s32 %s107, 1
      %s109 = scalar_select %p106, %s107, %s108
      %p112 = pneg %p106
      %p113 = scmp.eq.s32.totalorder %s13, 1
      %p114 = por %p112, %p113
      %p115 = scmp.ne.s32.totalorder %s107, %s110
      %p116 = scmp.eq.s32.totalorder %s13, 0
      %p117 = por %p115, %p116
      %p118 = scmp.ne.s32.totalorder %s107, %s110
      %p119 = scmp.eq.s32.totalorder %s18, 1
      %p120 = por %p118, %p119
      %p121 = scmp.ne.s32.totalorder %s110, %s111
      %p122 = scmp.eq.s32.totalorder %s18, 0
      %p123 = por %p121, %p122
      %p124 = scmp.ne.s32.totalorder %s110, %s111
      %p125 = scmp.eq.s32.totalorder %s19, 1
      %p126 = por %p124, %p125
      %p128 = scmp.ne.s32.totalorder %s111, %s127
      %p129 = scmp.eq.s32.totalorder %s19, 0
      %p130 = por %p128, %p129
      %s131 = ssub.s32 %s20, %s32
      %s132 = ssub.s32 %s21, %s28
      %s133 = sor.u32 %s131, %s132
      %p134 = scmp.eq.s32.totalorder %s133, 0
      %s136 = sadd.s32 %s135, 1
      %s137 = scalar_select %p134, %s135, %s136
      %p140 = pneg %p134
      %p141 = scmp.eq.s32.totalorder %s13, 1
      %p142 = por %p140, %p141
      %p143 = scmp.ne.s32.totalorder %s135, %s138
      %p144 = scmp.eq.s32.totalorder %s13, 0
      %p145 = por %p143, %p144
      %p146 = scmp.ne.s32.totalorder %s135, %s138
      %p147 = scmp.eq.s32.totalorder %s18, 1
      %p148 = por %p146, %p147
      %p149 = scmp.ne.s32.totalorder %s138, %s139
      %p150 = scmp.eq.s32.totalorder %s18, 0
      %p151 = por %p149, %p150
      %p152 = scmp.ne.s32.totalorder %s138, %s139
      %p153 = scmp.eq.s32.totalorder %s19, 1
      %p154 = por %p152, %p153
      %p156 = scmp.ne.s32.totalorder %s139, %s155
      %p157 = scmp.eq.s32.totalorder %s19, 0
      %p158 = por %p156, %p157
      %p159 = scmp.le.s32.totalorder 1, %s13
      %p160 = scmp.lt.s32.totalorder %s13, 3
      %p161 = pnand %p159, %p160
      %p162 = pneg %p161
      // Predicated region
      $region9: #{attention_block.1} parent=5 // pred_check
        _
      $region10: #{attention_block.1} parent=5 // pred_check_branch
        %164 = sbr.rel (%p161) target = $region12
      $region11: #{attention_block.1} parent=5 // pred_region
        %s165 = ssub.s32 %s13, 1
        // Predicated region
        $region13: #{attention_block.1} parent=11 // pred_check
          %p166 = pneg %p74
        $region14: #{attention_block.1} parent=11 // pred_check_branch
          %168 = sbr.rel (%p166) target = $region16
        $region15: #{attention_block.1} parent=11 // pred_region
          %170 = vsyncadd [#allocation4], 0
          %s172 = sshll.u32 %s1, 4
          %s173 = int_to_ptr.vmem [resolvable:$true] %s172
          %175 = dma.vmem_to_smem %s173, 16, [#allocation3], [#allocation4]
        $region16: #{attention_block.1} parent=11 // pred_fallthru
          _
        // Predicated region
        $region17: #{attention_block.1} parent=11 // pred_check
          %p176 = pneg %p95
        $region18: #{attention_block.1} parent=11 // pred_check_branch
          %178 = sbr.rel (%p176) target = $region20
        $region19: #{attention_block.1} parent=11 // pred_region
          _
        $region20: #{attention_block.1} parent=11 // pred_fallthru
          _
      $region12: #{attention_block.1} parent=5 // pred_fallthru
        _
      %p179 = scmp.lt.s32.totalorder %s13, 2
      // Predicated region
      $region21: #{attention_block.1} parent=5 // pred_check
        %p180 = pneg %p179
      $region22: #{attention_block.1} parent=5 // pred_check_branch
        %182 = sbr.rel (%p180) target = $region24
      $region23: #{attention_block.1} parent=5 // pred_region
        // Predicated region
        $region25: #{attention_block.1} parent=23 // pred_check
          %p183 = pneg %p47
        $region26: #{attention_block.1} parent=23 // pred_check_branch
          %185 = sbr.rel (%p183) target = $region28
        $region27: #{attention_block.1} parent=23 // pred_region
          %s186 = smul.u32 2, %s21
          %p187 = scmp.lt.s32.totalorder %s20, 1
          %s188 = scalar_select %p187, %s20, 1
          %p189 = scmp.lt.s32.totalorder %s186, 1
          %s190 = scalar_select %p189, %s186, 1
          %s191 = smul.addr %s188, 2
          %s192 = sadd.s32 %s190, %s191
          %s193 = smul.addr %s192, 4
          %s194 = scalar_lea.vmem %s0, %s193
          %s195 = smul.u32 2, %s21
        $region28: #{attention_block.1} parent=23 // pred_fallthru
          _
      $region24: #{attention_block.1} parent=5 // pred_fallthru
        _
      %p196 = scmp.le.s32.totalorder 1, %s13
      %p197 = scmp.lt.s32.totalorder %s13, 3
      %p198 = pnand %p196, %p197
      %p199 = pneg %p198
      // Predicated region
      $region29: #{attention_block.1} parent=5 // pred_check
        _
      $region30: #{attention_block.1} parent=5 // pred_check_branch
        %201 = sbr.rel (%p198) target = $region32
      $region31: #{attention_block.1} parent=5 // pred_region
        %s202 = ssub.s32 %s13, 1
        // Predicated region
        $region33: #{attention_block.1} parent=31 // pred_check
          %p203 = pneg %p74
        $region34: #{attention_block.1} parent=31 // pred_check_branch
          %205 = sbr.rel (%p203) target = $region36
        $region35: #{attention_block.1} parent=31 // pred_region
          %207 = dma.done [#allocation4], 16
        $region36: #{attention_block.1} parent=31 // pred_fallthru
          _
        %208 = sfence
        %s209 = smul.u32 2, %s23
        %p210 = scmp.lt.s32.totalorder %s22, 1
        %s211 = scalar_select %p210, %s22, 1
        %p212 = scmp.lt.s32.totalorder %s209, 1
        %s213 = scalar_select %p212, %s209, 1
        %s214 = smul.addr %s211, 2
        %s215 = sadd.s32 %s213, %s214
        %s216 = smul.addr %s215, 4
        %s217 = scalar_lea.vmem %s0, %s216
        %p218 = pneg %p53
        %p219 = pneg %p50
        %p220 = pneg %p74
        %p221 = pneg %p71
        %p222 = pneg %p95
        %p223 = pneg %p92
        %p224 = pneg %p123
        %p225 = pneg %p120
        %s226 = smul.u32 2, %s23
        %p227 = scmp.lt.s32.totalorder %s22, 1
        %s228 = scalar_select %p227, %s22, 1
        %p229 = scmp.lt.s32.totalorder %s226, 1
        %s230 = scalar_select %p229, %s226, 1
        %s231 = smul.addr %s228, 2
        %s232 = sadd.s32 %s230, %s231
        %s233 = smul.addr %s232, 4
        %s234 = scalar_lea.vmem %s3, %s233
        %p235 = pneg %p151
        %p236 = pneg %p148
        %s237 = smul.u32 2, %s23
        %p238 = scmp.lt.s32.totalorder %s22, 1
        %s239 = scalar_select %p238, %s22, 1
        %p240 = scmp.lt.s32.totalorder %s237, 1
        %s241 = scalar_select %p240, %s237, 1
        %s242 = smul.addr %s239, 2
        %s243 = sadd.s32 %s241, %s242
        %s244 = scalar_lea.vmem %s4, %s243
        %s245 = smul.u32 2, %s23
        %p246 = scmp.lt.s32.totalorder %s22, 1
        %s247 = scalar_select %p246, %s22, 1
        %p248 = scmp.lt.s32.totalorder %s245, 1
        %s249 = scalar_select %p248, %s245, 1
        %s250 = smul.addr %s247, 2
        %s251 = sadd.s32 %s249, %s250
        %s252 = smul.addr %s251, 4
        %s253 = scalar_lea.vmem %s0, %s252
        %s254 = smul.u32 2, %s23
        %s255 = smul.u32 2, %s23
        %p256 = scmp.lt.s32.totalorder %s22, 1
        %s257 = scalar_select %p256, %s22, 1
        %p258 = scmp.lt.s32.totalorder %s255, 1
        %s259 = scalar_select %p258, %s255, 1
        %s260 = smul.addr %s257, 2
        %s261 = sadd.s32 %s259, %s260
        %s262 = smul.addr %s261, 4
        %s263 = scalar_lea.vmem %s3, %s262
        %s264 = smul.u32 2, %s23
        %s265 = smul.u32 2, %s23
        %p266 = scmp.lt.s32.totalorder %s22, 1
        %s267 = scalar_select %p266, %s22, 1
        %p268 = scmp.lt.s32.totalorder %s265, 1
        %s269 = scalar_select %p268, %s265, 1
        %s270 = smul.addr %s267, 2
        %s271 = sadd.s32 %s269, %s270
        %s272 = scalar_lea.vmem %s4, %s271
        %s273 = smul.u32 2, %s23
        %v274 = vld [vmem:[%s253] sm:$0xff]
        %s275 = sld [smem:[#allocation2]]
        %v276 = vstv %s275
        %v277 = vadd.f32 %v276, 0.0
        %s278 = sld [smem:[#allocation3]]
        %v279 = vstv %s278
        %v280 = vmul.f32 %v274, %v279
        %v281 = vadd.f32 %v277, %v280
        %s282 = sld [smem:[#allocation3 + $0x1]]
        %v283 = vstv %s282
        %v284 = vmul.f32 %v274, %v283
        %v286 = vrot.slane %v284, 5
        %v287 = vrot.slane %v286, 4
        %v289 = vadd.f32 %v281, %v287
        %s290 = sld [smem:[#allocation3 + $0x2]]
        %v291 = vstv %s290
        %v292 = vmul.f32 %v274, %v291
        %v294 = vrot.slane %v292, 6
        %v295 = vrot.slane %v294, 4
        %v297 = vadd.f32 %v289, %v295
        %s298 = sld [smem:[#allocation3 + $0x3]]
        %v299 = vstv %s298
        %v300 = vmul.f32 %v274, %v299
        %v302 = vrot.slane %v300, 7
        %v303 = vrot.slane %v302, 4
        %v305 = vadd.f32 %v297, %v303
        %v306 = vxor.u32 %v305, 2147483648
        %v307 = vmul.f32 %v306, 1.442695
        %v308 = vpow.pop %v307
        %v309 = vadd.f32 %v308, 1.0
        %v310 = vrcp.pop %v309
        %v311 = vmul.f32 %v309, %v310
        %v312 = vsub.f32 1.0, %v311
        %v313 = vmul.f32 %v310, %v312
        %v314 = vadd.f32 %v310, %v313
        %vm315 = vweird.f32 %v309
        %vm316 = vweird.f32 %v310
        %vm317 = vmor %vm315, %vm316
        %v318 = vsel %vm317, %v310, %v314
        %v319 = vand.u32 2147483647, %v309
        %vm320 = vcmp.eq.f32.partialorder %v319, 8.507059e+37
        %v321 = vand.u32 %v309, 2147483648
        %v322 = vor.u32 1.1754944e-38, %v321
        %v323 = vsel %vm320, %v322, %v318
        %v324 = vmul.f32 1.0, %v323
        %v326 = vperm.slane %v324, 0
        %v327 = vperm.slane %v324, 4
        %v330 = vperm.slane %v326, 0
        %v331 = vperm.slane %v327, 0
        %v334 = vrot.slane %v331, 4
        %vm335 = vcmask 1043456
        %v336 = vsel %vm335, %v330, %v334
        %v338 = vmul.f32 %v274, %v336
        %339 = vst [vmem:[%s263] sm:$0xff] %v338
        %v340 = vrot.slane %v324, 3
        %vm341 = vcmask 1040384
        %v342 = vsel %vm341, %v324, %v340
        %v344 = vlaneseq
        %vm345 = vcmp.ge.s32.totalorder %v344, 0
        %vm346 = vcmp.lt.s32.totalorder %v344, 256
        %vm347 = vmand %vm345, %vm346
        %348 = vst.msk [vmem:[%s272] sm:$0x3] %vm347, %v342
        %s349 = smul.u32 2, %s23
        %p350 = scmp.lt.s32.totalorder %s22, 1
        %s351 = scalar_select %p350, %s22, 1
        %p352 = scmp.lt.s32.totalorder %s349, 1
        %s353 = scalar_select %p352, %s349, 1
        %s354 = smul.addr %s351, 2
        %s355 = sadd.s32 %s353, %s354
        %s356 = smul.addr %s355, 4
        %s357 = scalar_lea.vmem %s3, %s356
        %s358 = smul.u32 2, %s23
        %p359 = scmp.lt.s32.totalorder %s22, 1
        %s360 = scalar_select %p359, %s22, 1
        %p361 = scmp.lt.s32.totalorder %s358, 1
        %s362 = scalar_select %p361, %s358, 1
        %s363 = smul.addr %s360, 2
        %s364 = sadd.s32 %s362, %s363
        %s365 = scalar_lea.vmem %s4, %s364
        // Predicated region
        $region37: #{attention_block.1} parent=31 // pred_check
          %p366 = pneg %p120
        $region38: #{attention_block.1} parent=31 // pred_check_branch
          %368 = sbr.rel (%p366) target = $region40
        $region39: #{attention_block.1} parent=31 // pred_region
          %s369 = smul.u32 2, %s23
        $region40: #{attention_block.1} parent=31 // pred_fallthru
          _
        // Predicated region
        $region41: #{attention_block.1} parent=31 // pred_check
          %p370 = pneg %p148
        $region42: #{attention_block.1} parent=31 // pred_check_branch
          %372 = sbr.rel (%p370) target = $region44
        $region43: #{attention_block.1} parent=31 // pred_region
          %s373 = smul.u32 2, %s23
        $region44: #{attention_block.1} parent=31 // pred_fallthru
          _
      $region32: #{attention_block.1} parent=5 // pred_fallthru
        _
      %p374 = scmp.le.s32.totalorder 2, %s13
      // Predicated region
      $region45: #{attention_block.1} parent=5 // pred_check
        %p375 = pneg %p374
      $region46: #{attention_block.1} parent=5 // pred_check_branch
        %377 = sbr.rel (%p375) target = $region48
      $region47: #{attention_block.1} parent=5 // pred_region
        %s378 = ssub.s32 %s13, 2
        // Predicated region
        $region49: #{attention_block.1} parent=47 // pred_check
          %p379 = pneg %p126
        $region50: #{attention_block.1} parent=47 // pred_check_branch
          %381 = sbr.rel (%p379) target = $region52
        $region51: #{attention_block.1} parent=47 // pred_region
          %s382 = smul.u32 2, %s25
          %p383 = scmp.lt.s32.totalorder %s24, 1
          %s384 = scalar_select %p383, %s24, 1
          %p385 = scmp.lt.s32.totalorder %s382, 1
          %s386 = scalar_select %p385, %s382, 1
          %s387 = smul.addr %s384, 2
          %s388 = sadd.s32 %s386, %s387
          %s389 = smul.addr %s388, 4
          %s390 = scalar_lea.vmem %s3, %s389
        $region52: #{attention_block.1} parent=47 // pred_fallthru
          _
        // Predicated region
        $region53: #{attention_block.1} parent=47 // pred_check
          %p391 = pneg %p154
        $region54: #{attention_block.1} parent=47 // pred_check_branch
          %393 = sbr.rel (%p391) target = $region56
        $region55: #{attention_block.1} parent=47 // pred_region
          %s394 = smul.u32 2, %s25
          %p395 = scmp.lt.s32.totalorder %s24, 1
          %s396 = scalar_select %p395, %s24, 1
          %p397 = scmp.lt.s32.totalorder %s394, 1
          %s398 = scalar_select %p397, %s394, 1
          %s399 = smul.addr %s396, 2
          %s400 = sadd.s32 %s398, %s399
          %s401 = scalar_lea.vmem %s4, %s400
        $region56: #{attention_block.1} parent=47 // pred_fallthru
          _
      $region48: #{attention_block.1} parent=5 // pred_fallthru
        _
    $region6: #{attention_block.1} parent=1 // loop_footer
      %s17 = sadd.s32 1, %s13
    $region7: #{attention_block.1} parent=1 // loop_footer_branch
      %12 = sbr.rel target = $region3
    $region8: #{attention_block.1} parent=1 // loop_exit
      _
    %402 = vsyncpa [#allocation4], 1
    %s403 = scalar_lea.sflag [#allocation4], 1
    %404 = vsyncpa %s403, 1

</llo_original>
